<compile_context>
chip_gen: v6e
topology: v6e:2x2x1
jax: 0.10.0
libtpu: 0.0.40
codegen_flags: <defaults>
</compile_context>

<pallas_src>
import functools

import jax
import jax.numpy as jnp
from jax import lax
from jax.experimental import pallas as pl
from jax.experimental.pallas import tpu as pltpu


# ----------------------------------------------------------------------------
# symbolic helpers (verbatim semantics; no tensor compute -> plain Python)
# ----------------------------------------------------------------------------
def first_braket(sequence):
    outputs = None
    bra_num = 0
    hold_pos = None
    for i, v in enumerate(sequence):
        if v == '(':
            if bra_num == 0:
                hold_pos = i
            bra_num += 1
        if v == ')':
            bra_num -= 1
            if bra_num == 0:
                outputs = sequence[hold_pos:i + 1]
                return outputs
    return outputs


def inbraket(sequence):
    outputs = []
    bra_num = 0
    hold_pos = None
    for i, v in enumerate(sequence):
        if v == '(':
            if bra_num == 0:
                hold_pos = i
            bra_num += 1
        if v == ')':
            bra_num -= 1
            if bra_num == 0:
                outputs.append(sequence[hold_pos:i + 1])
    return outputs


# ----------------------------------------------------------------------------
# Pallas kernel: predicate_net hot path
#
#   Per CHUNK-lane sub-chunk of the x block (natural [TILE_N, D] layout):
#     hT = relu(W1^T @ x_chunk^T + b1)     [H, CHUNK]   MXU (dot_general)
#     z  = sum_H(hT * w2) + b2             [1, CHUNK]   VPU mul + sublane reduce
#     o  = 0.5 * (1 + tanh(0.5 * z))       [1, CHUNK]   exact sigmoid, one EUP op
# ----------------------------------------------------------------------------
def _predicate_net_kernel(x_ref, w1T_ref, b1_ref, w2_ref, b2_ref, o_ref, *,
                          chunk):
    # Resident operands: load once per grid step, reuse across sub-chunks.
    w1t = w1T_ref[...]                       # [H, D]
    b1c = b1_ref[...]                        # [H, 1]
    w2c = w2_ref[...]                        # [H, 1]
    b2s = b2_ref[0, 0]                       # scalar bias (SMEM)

    tile_n = x_ref.shape[0]
    n_chunks = tile_n // chunk               # static

    def body(c, carry):
        start = pl.multiple_of(c * chunk, chunk)
        x_blk = x_ref[pl.ds(start, chunk), :]            # [CHUNK, D]
        # hT[h, n] = sum_d W1^T[h, d] * x[n, d]  (MXU, f32 accumulation).
        hT = lax.dot_general(
            w1t, x_blk,
            dimension_numbers=(((1,), (1,)), ((), ())),
            preferred_element_type=jnp.float32)           # [H, CHUNK]
        hT = jnp.maximum(hT + b1c, 0.0)                   # bias + ReLU (VPU)
        # Width-1 second layer: VPU multiply + sublane reduce (no 1-col MXU).
        z = jnp.sum(hT * w2c, axis=0, keepdims=True) + b2s  # [1, CHUNK]
        # Exact sigmoid via a single EUP transcendental.
        o_ref[:, pl.ds(start, chunk)] = (
            0.5 * (1.0 + jnp.tanh(0.5 * z))).astype(o_ref.dtype)
        return carry

    lax.fori_loop(0, n_chunks, body, 0, unroll=True)


def predicate_net_pallas(x, w1, b1, w2, b2, *, tile_n=8192, chunk=1024):
    """x: [N, D] (f32 or bf16) -> [N, 1] f32 predicate scores.

    w1: [D, H], b1: [H], w2: [H], b2: scalar.
    """
    n, d = x.shape
    h = w1.shape[1]

    # Shrink the tile for small inputs (kept a multiple of the compute chunk
    # so the in-kernel loop stays uniform).  The 8192 default keeps the
    # double-buffered x block + chunk intermediates well inside even v5e's
    # 16 MiB scoped VMEM default (and v7x's 32 MiB), so no override needed.
    tile_n = max(chunk, min(tile_n, pl.cdiv(n, chunk) * chunk))

    # Tiny resident operands (layout plumbing only; x itself is untouched).
    w1T = w1.T.astype(x.dtype)                        # [H, D]   (VMEM resident)
    b1c = b1.reshape(h, 1).astype(jnp.float32)        # [H, 1]   (VMEM resident)
    w2c = w2.reshape(h, 1).astype(jnp.float32)        # [H, 1]   (VMEM resident)
    b2s = jnp.asarray(b2, jnp.float32).reshape(1, 1)  # (1, 1)   scalar in SMEM

    grid = (pl.cdiv(n, tile_n),)                      # partial last block OK:
    # garbage lanes never feed a cross-N reduce and are dropped by [:n] below.

    out = pl.pallas_call(
        functools.partial(_predicate_net_kernel, chunk=chunk),
        out_shape=jax.ShapeDtypeStruct((1, n), jnp.float32),
        grid=grid,
        in_specs=[
            pl.BlockSpec((tile_n, d), lambda i: (i, 0)),   # x, natural layout
            pl.BlockSpec((h, d), lambda i: (0, 0)),        # W1^T (resident)
            pl.BlockSpec((h, 1), lambda i: (0, 0)),        # b1   (resident)
            pl.BlockSpec((h, 1), lambda i: (0, 0)),        # w2   (resident)
            pl.BlockSpec(memory_space=pltpu.MemorySpace.SMEM),  # b2 scalar
        ],
        out_specs=pl.BlockSpec((1, tile_n), lambda i: (0, i)),  # lane-dense
        compiler_params=pltpu.CompilerParams(
            dimension_semantics=("parallel",)),   # shard N across v7x's 2 TCs
        cost_estimate=pl.CostEstimate(
            flops=2 * n * d * h + 2 * n * h,
            transcendentals=n,
            bytes_accessed=x.dtype.itemsize * n * d + 4 * n + 4 * (h * d + 2 * h + 1)),
    )(x, w1T, b1c, w2c, b2s)

    # Back to the module's (N, 1) score convention.
    return out[0, :n].reshape(n, 1)


# ----------------------------------------------------------------------------
# NeuroAction wrapper
# ----------------------------------------------------------------------------
class NeuroAction:
    def __init__(self, name, params, precond, effect,
                 feature_dim=32, hidden_dim=32, return_type='vector'):
        self.name = name
        self.params = params
        self.precond = precond
        self.effect = effect
        self.return_type = return_type

        # Deterministic parameter init (synthetic; no checkpoint load).
        k1, k2 = jax.random.split(jax.random.PRNGKey(0))
        scale1 = 1.0 / jnp.sqrt(jnp.float32(feature_dim))
        scale2 = 1.0 / jnp.sqrt(jnp.float32(hidden_dim))
        self.w1 = jax.random.normal(k1, (feature_dim, hidden_dim),
                                    jnp.float32) * scale1
        self.b1 = jnp.zeros((hidden_dim,), jnp.float32)
        self.w2 = jax.random.normal(k2, (hidden_dim,), jnp.float32) * scale2
        self.b2 = jnp.zeros((), jnp.float32)

    def __str__(self):
        return 'name:{}\n--params:{}\n--precond:{}\n--effect:{}'.format(
            self.name, self.params, self.precond, self.effect)

    @staticmethod
    def parse_action(action_script):
        assert action_script[0] == '(', 'not a valid action!'
        assert action_script[-1] == ')', 'not a valid action!'
        assert action_script[1] == ':', 'not start with : action!'
        action_name = action_script[9:action_script.index('\n\t')]
        action_script = action_script[action_script.index('\n\t') + 2:-1]
        parameters = action_script[action_script.index('(') + 1:
                                   action_script.index(')')]
        parameters = parameters.split(' ')
        action_script = action_script[action_script.index(')') + 3:]
        precond = None
        if action_script[1:8] == 'precond':
            precond = first_braket(action_script).replace('\n', '').replace('\t', '')
            action_script = action_script[action_script.index(')') + 3:]
        effect = first_braket(action_script).replace('\n', '').replace('\t', '')
        return (action_name, parameters, precond, effect)

    @staticmethod
    def parse_predicate(predicate_script):
        assert predicate_script[0] == '(', 'not a valid action!'
        assert predicate_script[-1] == ')', 'not a valid action!'
        assert predicate_script[1] == ':', 'not start with : predicate!'
        predicate_script = predicate_script[
            predicate_script[1:-1].index('(') + 1:-1]
        name = predicate_script[1:predicate_script.index(' ')]
        params = []
        types = []
        return (name, params, types)

    @staticmethod
    def parse_derived(derived_script):
        assert derived_script[0] == '(', 'not a valid action!'
        assert derived_script[-1] == ')', 'not a valid action!'
        assert derived_script[1] == ':', 'not start with : derived!'
        derived_script = derived_script[derived_script[1:-1].index('(') + 1:-1]
        name = derived_script[1:derived_script.index(' ')]
        param, derived_effect = inbraket(derived_script)
        effect = derived_effect
        params = param[param.index('?'):-1].split(' ')
        types = []
        return (name, params, effect, types)

    def predicate_net(self, x):
        return predicate_net_pallas(x, self.w1, self.b1, self.w2, self.b2)

    def forward(self, x):
        return self.__call__((x,), executor=None)

    def __call__(self, args, executor):
        if self.return_type == 'boolean':
            # TODO(synk): symbolic executor branch (filter(scene(), ...)) is a
            # program-interpreter call with no tensor/Pallas equivalent.
            return executor(executor.parse('filter(scene(),{})'))
        return self.predicate_net(*args)


# ----------------------------------------------------------------------------
# main
# ----------------------------------------------------------------------------
if __name__ == "__main__":
    # Objects x features; N is deliberately not a multiple of the compute
    # chunk so the partial-block path is exercised.
    N, D, H = 1000, 32, 32

    key = jax.random.PRNGKey(0)
    x = jax.random.normal(key, (N, D), jnp.float32)

    action = NeuroAction(
        name="stack",
        params=["?x", "?y"],
        precond="(clear ?x)",
        effect="(on ?x ?y)",
        feature_dim=D,
        hidden_dim=H,
        return_type='vector',
    )

    out = jax.block_until_ready(action.forward(x))

    # sanity: pure-JAX reference of the same MLP (exact sigmoid in the kernel;
    # residual tolerance only reflects f32 matmul rounding-mode differences).
    ref = jax.nn.sigmoid(
        jnp.maximum(x @ action.w1 + action.b1, 0.0) @ action.w2[:, None]
        + action.b2)

    assert out.shape == (N, 1), f"bad shape {out.shape}"
    assert jnp.allclose(out, ref, atol=2e-3, rtol=2e-3), "mismatch vs reference"

    print("KERNEL_OK")
</pallas_src>

<mosaic_0001>
module attributes {stable_mosaic.version = 11 : i64} {
  func.func @_predicate_net_kernel(%arg0: i32, %arg1: memref<1024x32xf32, #tpu.memory_space<vmem>>, %arg2: memref<32x32xf32, #tpu.memory_space<vmem>>, %arg3: memref<32x1xf32, #tpu.memory_space<vmem>>, %arg4: memref<32x1xf32, #tpu.memory_space<vmem>>, %arg5: memref<1x1xf32, #tpu.memory_space<smem>>, %arg6: memref<1x1024xf32, #tpu.memory_space<vmem>>) attributes {dimension_semantics = [#tpu.dimension_semantics<parallel>], iteration_bounds = array<i64: 1>, scalar_prefetch = 0 : i64, scratch_operands = 0 : i64, tpu.core_type = #tpu.core_type<tc>, window_params = [{transform_indices = @transform_0, window_bounds = array<i64: 1024, 32>}, {pipeline_mode = #tpu.pipeline_mode<synchronous>, transform_indices = @transform_1, window_bounds = array<i64: 32, 32>}, {pipeline_mode = #tpu.pipeline_mode<synchronous>, transform_indices = @transform_2, window_bounds = array<i64: 32, 1>}, {pipeline_mode = #tpu.pipeline_mode<synchronous>, transform_indices = @transform_3, window_bounds = array<i64: 32, 1>}, {transform_indices = @transform_4, window_bounds = array<i64: 1, 1>}, {transform_indices = @transform_5, window_bounds = array<i64: 1, 1024>}]} {
    %c0 = arith.constant 0 : index
    %c0_0 = arith.constant 0 : index
    %0 = vector.load %arg2[%c0, %c0_0] : memref<32x32xf32, #tpu.memory_space<vmem>>, vector<32x32xf32>
    %c0_1 = arith.constant 0 : index
    %c0_2 = arith.constant 0 : index
    %1 = vector.load %arg3[%c0_1, %c0_2] : memref<32x1xf32, #tpu.memory_space<vmem>>, vector<32x1xf32>
    %c0_3 = arith.constant 0 : index
    %c0_4 = arith.constant 0 : index
    %2 = vector.load %arg4[%c0_3, %c0_4] : memref<32x1xf32, #tpu.memory_space<vmem>>, vector<32x1xf32>
    %c0_5 = arith.constant 0 : index
    %c0_6 = arith.constant 0 : index
    %3 = memref.load %arg5[%c0_5, %c0_6] : memref<1x1xf32, #tpu.memory_space<smem>>
    %c0_i32 = arith.constant 0 : i32
    %c1024_i32 = arith.constant 1024 : i32
    %4 = arith.muli %c0_i32, %c1024_i32 : i32
    %5 = tpu.assume_multiple %4, 1024 : i32
    %6 = arith.index_cast %5 : i32 to index
    %c0_7 = arith.constant 0 : index
    %7 = vector.load %arg1[%6, %c0_7] : memref<1024x32xf32, #tpu.memory_space<vmem>>, vector<1024x32xf32>
    %cst = arith.constant dense<0.000000e+00> : vector<32x1024xf32>
    %8 = tpu.matmul %0, %7, %cst {dimension_numbers = #tpu.dot_dimension_numbers<[1], [1], [0], [0], [0, 0, 1, 0], [], []>} : vector<32x32xf32>, vector<1024x32xf32>, vector<32x1024xf32> -> vector<32x1024xf32>
    %9 = vector.broadcast %1 : vector<32x1xf32> to vector<32x1024xf32>
    %10 = arith.addf %8, %9 : vector<32x1024xf32>
    %cst_8 = arith.constant 0.000000e+00 : f32
    %11 = vector.broadcast %cst_8 : f32 to vector<32x1024xf32>
    %12 = arith.maximumf %10, %11 : vector<32x1024xf32>
    %13 = vector.broadcast %2 : vector<32x1xf32> to vector<32x1024xf32>
    %14 = arith.mulf %12, %13 : vector<32x1024xf32>
    %cst_9 = arith.constant dense<0.000000e+00> : vector<1024xf32>
    %15 = vector.multi_reduction <add>, %14, %cst_9 [0] : vector<32x1024xf32> to vector<1024xf32>
    %16 = vector.shape_cast %15 : vector<1024xf32> to vector<1x1024xf32>
    %17 = vector.broadcast %3 : f32 to vector<1x1024xf32>
    %18 = arith.addf %16, %17 : vector<1x1024xf32>
    %cst_10 = arith.constant 5.000000e-01 : f32
    %19 = vector.broadcast %cst_10 : f32 to vector<1x1024xf32>
    %20 = arith.mulf %19, %18 : vector<1x1024xf32>
    %21 = math.tanh %20 : vector<1x1024xf32>
    %cst_11 = arith.constant 1.000000e+00 : f32
    %22 = vector.broadcast %cst_11 : f32 to vector<1x1024xf32>
    %23 = arith.addf %22, %21 : vector<1x1024xf32>
    %cst_12 = arith.constant 5.000000e-01 : f32
    %24 = vector.broadcast %cst_12 : f32 to vector<1x1024xf32>
    %25 = arith.mulf %24, %23 : vector<1x1024xf32>
    %c0_13 = arith.constant 0 : index
    %26 = arith.index_cast %5 : i32 to index
    %27 = vector.load %arg6[%c0_13, %26] : memref<1x1024xf32, #tpu.memory_space<vmem>>, vector<1x1024xf32>
    tpu.vector_store %arg6[%c0_13, %26], %25 {strides = array<i32>} : memref<1x1024xf32, #tpu.memory_space<vmem>>, vector<1x1024xf32>,
    %c1_i32 = arith.constant 1 : i32
    return
  }
  func.func @transform_0(%arg0: i32) -> (i32, i32) {
    %c0_i32 = arith.constant 0 : i32
    %c0_i32_0 = arith.constant 0 : i32
    return %arg0, %c0_i32 : i32, i32
  }
  func.func @transform_1(%arg0: i32) -> (i32, i32) {
    %c0_i32 = arith.constant 0 : i32
    %c0_i32_0 = arith.constant 0 : i32
    %c0_i32_1 = arith.constant 0 : i32
    return %c0_i32, %c0_i32_0 : i32, i32
  }
  func.func @transform_2(%arg0: i32) -> (i32, i32) {
    %c0_i32 = arith.constant 0 : i32
    %c0_i32_0 = arith.constant 0 : i32
    %c0_i32_1 = arith.constant 0 : i32
    return %c0_i32, %c0_i32_0 : i32, i32
  }
  func.func @transform_3(%arg0: i32) -> (i32, i32) {
    %c0_i32 = arith.constant 0 : i32
    %c0_i32_0 = arith.constant 0 : i32
    %c0_i32_1 = arith.constant 0 : i32
    return %c0_i32, %c0_i32_0 : i32, i32
  }
  func.func @transform_4(%arg0: i32) -> (i32, i32) {
    %c0_i32 = arith.constant 0 : i32
    %c0_i32_0 = arith.constant 0 : i32
    %c0_i32_1 = arith.constant 0 : i32
    return %c0_i32, %c0_i32_0 : i32, i32
  }
  func.func @transform_5(%arg0: i32) -> (i32, i32) {
    %c0_i32 = arith.constant 0 : i32
    %c0_i32_0 = arith.constant 0 : i32
    return %c0_i32, %arg0 : i32, i32
  }
}

</mosaic_0001>

<llo_original>
// kernel: tpu_custom_call.1
$region0: #{tpu_custom_call.1}
  #allocation0 [shape = 'u32[]', space=smem, size = 0x4, offset = 0x4, fixed_abs, tag = 'smem constant byte address 0x4 - core index']
  #allocation1 [shape = 'u32[144,128]{1,0:T(1,128)}', space=vmem, size = 0x12000, scoped, tag = 'internal scratch']
  #allocation2 [shape = 'f32[1,1]{1,0:T(1,128)S(6)}', space=smem, size = 0x200, scoped, tag = 'scoped memory for tpu_custom_call.1']
  %s0 = inlined_call_operand.vmem [shape: f32[1000,32], index: 0, kind: input, shape index: {}]
  %s1 = inlined_call_operand.vmem [shape: f32[32,32], index: 1, kind: input, shape index: {}]
  %s2 = inlined_call_operand.vmem [shape: f32[32,1], index: 2, kind: input, shape index: {}]
  %s3 = inlined_call_operand.vmem [shape: f32[32,1], index: 3, kind: input, shape index: {}]
  %s4 = inlined_call_operand.<no memory space> [shape: f32[1,1], index: 4, kind: input, shape index: {}]
  %s5 = inlined_call_operand.hbm [shape: f32[1,1000], index: 5, kind: output, shape index: {}]
  %s6 = sld [smem:[#allocation0]]
  $region30: #{tpu_custom_call.1} parent=0
    _
  %s8 = ssub.s32 1, %s6
  %s9 = scalar_select 0, %s8, %s6
  %10 = sst [smem:[#allocation2]] %s4
  $region1: #{tpu_custom_call.1} parent=0
    #allocation3 [shape = 'u8[4096]{0}', space=vmem, size = 0x1000, scoped, tag = 'output window, operand 0, single buffered']
    #allocation4 [shape = 's32[1]{0}', space=sflag, size = 0x4, scoped, tag = 'scoped memory for tpu_custom_call.1']
    %11 = vsyncpa [#allocation4], 0
    // Predicated region
    $region2: #{tpu_custom_call.1} parent=1 // pred_check
      _
    $region3: #{tpu_custom_call.1} parent=1 // pred_check_branch
      %13 = sbr.rel (0) target = $region5
    $region4: #{tpu_custom_call.1} parent=1 // pred_region
      _
    $region5: #{tpu_custom_call.1} parent=1 // pred_fallthru
      _
    // Predicated region
    $region6: #{tpu_custom_call.1} parent=1 // pred_check
      _
    $region7: #{tpu_custom_call.1} parent=1 // pred_check_branch
      %15 = sbr.rel (0) target = $region9
    $region8: #{tpu_custom_call.1} parent=1 // pred_region
      _
    $region9: #{tpu_custom_call.1} parent=1 // pred_fallthru
      _
    // Predicated region
    $region10: #{tpu_custom_call.1} parent=1 // pred_check
      _
    $region11: #{tpu_custom_call.1} parent=1 // pred_check_branch
      %17 = sbr.rel (0) target = $region13
    $region12: #{tpu_custom_call.1} parent=1 // pred_region
      _
    $region13: #{tpu_custom_call.1} parent=1 // pred_fallthru
      _
    // Predicated region
    $region14: #{tpu_custom_call.1} parent=1 // pred_check
      _
    $region15: #{tpu_custom_call.1} parent=1 // pred_check_branch
      %19 = sbr.rel (0) target = $region17
    $region16: #{tpu_custom_call.1} parent=1 // pred_region
      _
    $region17: #{tpu_custom_call.1} parent=1 // pred_fallthru
      _
    // Predicated region
    $region18: #{tpu_custom_call.1} parent=1 // pred_check
      _
    $region19: #{tpu_custom_call.1} parent=1 // pred_check_branch
      %21 = sbr.rel (0) target = $region21
    $region20: #{tpu_custom_call.1} parent=1 // pred_region
      _
    $region21: #{tpu_custom_call.1} parent=1 // pred_fallthru
      _
    %v22 = vld [vmem:[%s1] sm:$0xff]
    %v23 = vld [vmem:[%s1 + $0x8] sm:$0xff]
    %v24 = vld [vmem:[%s1 + $0x10] sm:$0xff]
    %v25 = vld [vmem:[%s1 + $0x18] sm:$0xff]
    %v26 = vld [vmem:[%s2] sm:$0xff]
    %v27 = vld [vmem:[%s2 + $0x8] sm:$0xff]
    %v28 = vld [vmem:[%s2 + $0x10] sm:$0xff]
    %v29 = vld [vmem:[%s2 + $0x18] sm:$0xff]
    %v30 = vld [vmem:[%s3] sm:$0xff]
    %v31 = vld [vmem:[%s3 + $0x8] sm:$0xff]
    %v32 = vld [vmem:[%s3 + $0x10] sm:$0xff]
    %v33 = vld [vmem:[%s3 + $0x18] sm:$0xff]
    %s34 = sld [smem:[#allocation2]]
    %v35 = vld [vmem:[%s0] sm:$0xff]
    %v36 = vld [vmem:[%s0 + $0x8] sm:$0xff]
    %v37 = vld [vmem:[%s0 + $0x10] sm:$0xff]
    %v38 = vld [vmem:[%s0 + $0x18] sm:$0xff]
    %v39 = vld [vmem:[%s0 + $0x20] sm:$0xff]
    %v40 = vld [vmem:[%s0 + $0x28] sm:$0xff]
    %v41 = vld [vmem:[%s0 + $0x30] sm:$0xff]
    %v42 = vld [vmem:[%s0 + $0x38] sm:$0xff]
    %v43 = vld [vmem:[%s0 + $0x40] sm:$0xff]
    %v44 = vld [vmem:[%s0 + $0x48] sm:$0xff]
    %v45 = vld [vmem:[%s0 + $0x50] sm:$0xff]
    %v46 = vld [vmem:[%s0 + $0x58] sm:$0xff]
    %v47 = vld [vmem:[%s0 + $0x60] sm:$0xff]
    %v48 = vld [vmem:[%s0 + $0x68] sm:$0xff]
    %v49 = vld [vmem:[%s0 + $0x70] sm:$0xff]
    %v50 = vld [vmem:[%s0 + $0x78] sm:$0xff]
    %v51 = vld [vmem:[%s0 + $0x80] sm:$0xff]
    %v52 = vld [vmem:[%s0 + $0x88] sm:$0xff]
    %v53 = vld [vmem:[%s0 + $0x90] sm:$0xff]
    %v54 = vld [vmem:[%s0 + $0x98] sm:$0xff]
    %v55 = vld [vmem:[%s0 + $0xa0] sm:$0xff]
    %v56 = vld [vmem:[%s0 + $0xa8] sm:$0xff]
    %v57 = vld [vmem:[%s0 + $0xb0] sm:$0xff]
    %v58 = vld [vmem:[%s0 + $0xb8] sm:$0xff]
    %v59 = vld [vmem:[%s0 + $0xc0] sm:$0xff]
    %v60 = vld [vmem:[%s0 + $0xc8] sm:$0xff]
    %v61 = vld [vmem:[%s0 + $0xd0] sm:$0xff]
    %v62 = vld [vmem:[%s0 + $0xd8] sm:$0xff]
    %v63 = vld [vmem:[%s0 + $0xe0] sm:$0xff]
    %v64 = vld [vmem:[%s0 + $0xe8] sm:$0xff]
    %v65 = vld [vmem:[%s0 + $0xf0] sm:$0xff]
    %v66 = vld [vmem:[%s0 + $0xf8] sm:$0xff]
    %v67 = vld [vmem:[%s0 + $0x100] sm:$0xff]
    %v68 = vld [vmem:[%s0 + $0x108] sm:$0xff]
    %v69 = vld [vmem:[%s0 + $0x110] sm:$0xff]
    %v70 = vld [vmem:[%s0 + $0x118] sm:$0xff]
    %v71 = vld [vmem:[%s0 + $0x120] sm:$0xff]
    %v72 = vld [vmem:[%s0 + $0x128] sm:$0xff]
    %v73 = vld [vmem:[%s0 + $0x130] sm:$0xff]
    %v74 = vld [vmem:[%s0 + $0x138] sm:$0xff]
    %v75 = vld [vmem:[%s0 + $0x140] sm:$0xff]
    %v76 = vld [vmem:[%s0 + $0x148] sm:$0xff]
    %v77 = vld [vmem:[%s0 + $0x150] sm:$0xff]
    %v78 = vld [vmem:[%s0 + $0x158] sm:$0xff]
    %v79 = vld [vmem:[%s0 + $0x160] sm:$0xff]
    %v80 = vld [vmem:[%s0 + $0x168] sm:$0xff]
    %v81 = vld [vmem:[%s0 + $0x170] sm:$0xff]
    %v82 = vld [vmem:[%s0 + $0x178] sm:$0xff]
    %v83 = vld [vmem:[%s0 + $0x180] sm:$0xff]
    %v84 = vld [vmem:[%s0 + $0x188] sm:$0xff]
    %v85 = vld [vmem:[%s0 + $0x190] sm:$0xff]
    %v86 = vld [vmem:[%s0 + $0x198] sm:$0xff]
    %v87 = vld [vmem:[%s0 + $0x1a0] sm:$0xff]
    %v88 = vld [vmem:[%s0 + $0x1a8] sm:$0xff]
    %v89 = vld [vmem:[%s0 + $0x1b0] sm:$0xff]
    %v90 = vld [vmem:[%s0 + $0x1b8] sm:$0xff]
    %v91 = vld [vmem:[%s0 + $0x1c0] sm:$0xff]
    %v92 = vld [vmem:[%s0 + $0x1c8] sm:$0xff]
    %v93 = vld [vmem:[%s0 + $0x1d0] sm:$0xff]
    %v94 = vld [vmem:[%s0 + $0x1d8] sm:$0xff]
    %v95 = vld [vmem:[%s0 + $0x1e0] sm:$0xff]
    %v96 = vld [vmem:[%s0 + $0x1e8] sm:$0xff]
    %v97 = vld [vmem:[%s0 + $0x1f0] sm:$0xff]
    %v98 = vld [vmem:[%s0 + $0x1f8] sm:$0xff]
    %v99 = vld [vmem:[%s0 + $0x200] sm:$0xff]
    %v100 = vld [vmem:[%s0 + $0x208] sm:$0xff]
    %v101 = vld [vmem:[%s0 + $0x210] sm:$0xff]
    %v102 = vld [vmem:[%s0 + $0x218] sm:$0xff]
    %v103 = vld [vmem:[%s0 + $0x220] sm:$0xff]
    %v104 = vld [vmem:[%s0 + $0x228] sm:$0xff]
    %v105 = vld [vmem:[%s0 + $0x230] sm:$0xff]
    %v106 = vld [vmem:[%s0 + $0x238] sm:$0xff]
    %v107 = vld [vmem:[%s0 + $0x240] sm:$0xff]
    %v108 = vld [vmem:[%s0 + $0x248] sm:$0xff]
    %v109 = vld [vmem:[%s0 + $0x250] sm:$0xff]
    %v110 = vld [vmem:[%s0 + $0x258] sm:$0xff]
    %v111 = vld [vmem:[%s0 + $0x260] sm:$0xff]
    %v112 = vld [vmem:[%s0 + $0x268] sm:$0xff]
    %v113 = vld [vmem:[%s0 + $0x270] sm:$0xff]
    %v114 = vld [vmem:[%s0 + $0x278] sm:$0xff]
    %v115 = vld [vmem:[%s0 + $0x280] sm:$0xff]
    %v116 = vld [vmem:[%s0 + $0x288] sm:$0xff]
    %v117 = vld [vmem:[%s0 + $0x290] sm:$0xff]
    %v118 = vld [vmem:[%s0 + $0x298] sm:$0xff]
    %v119 = vld [vmem:[%s0 + $0x2a0] sm:$0xff]
    %v120 = vld [vmem:[%s0 + $0x2a8] sm:$0xff]
    %v121 = vld [vmem:[%s0 + $0x2b0] sm:$0xff]
    %v122 = vld [vmem:[%s0 + $0x2b8] sm:$0xff]
    %v123 = vld [vmem:[%s0 + $0x2c0] sm:$0xff]
    %v124 = vld [vmem:[%s0 + $0x2c8] sm:$0xff]
    %v125 = vld [vmem:[%s0 + $0x2d0] sm:$0xff]
    %v126 = vld [vmem:[%s0 + $0x2d8] sm:$0xff]
    %v127 = vld [vmem:[%s0 + $0x2e0] sm:$0xff]
    %v128 = vld [vmem:[%s0 + $0x2e8] sm:$0xff]
    %v129 = vld [vmem:[%s0 + $0x2f0] sm:$0xff]
    %v130 = vld [vmem:[%s0 + $0x2f8] sm:$0xff]
    %v131 = vld [vmem:[%s0 + $0x300] sm:$0xff]
    %v132 = vld [vmem:[%s0 + $0x308] sm:$0xff]
    %v133 = vld [vmem:[%s0 + $0x310] sm:$0xff]
    %v134 = vld [vmem:[%s0 + $0x318] sm:$0xff]
    %v135 = vld [vmem:[%s0 + $0x320] sm:$0xff]
    %v136 = vld [vmem:[%s0 + $0x328] sm:$0xff]
    %v137 = vld [vmem:[%s0 + $0x330] sm:$0xff]
    %v138 = vld [vmem:[%s0 + $0x338] sm:$0xff]
    %v139 = vld [vmem:[%s0 + $0x340] sm:$0xff]
    %v140 = vld [vmem:[%s0 + $0x348] sm:$0xff]
    %v141 = vld [vmem:[%s0 + $0x350] sm:$0xff]
    %v142 = vld [vmem:[%s0 + $0x358] sm:$0xff]
    %v143 = vld [vmem:[%s0 + $0x360] sm:$0xff]
    %v144 = vld [vmem:[%s0 + $0x368] sm:$0xff]
    %v145 = vld [vmem:[%s0 + $0x370] sm:$0xff]
    %v146 = vld [vmem:[%s0 + $0x378] sm:$0xff]
    %v147 = vld [vmem:[%s0 + $0x380] sm:$0xff]
    %v148 = vld [vmem:[%s0 + $0x388] sm:$0xff]
    %v149 = vld [vmem:[%s0 + $0x390] sm:$0xff]
    %v150 = vld [vmem:[%s0 + $0x398] sm:$0xff]
    %v151 = vld [vmem:[%s0 + $0x3a0] sm:$0xff]
    %v152 = vld [vmem:[%s0 + $0x3a8] sm:$0xff]
    %v153 = vld [vmem:[%s0 + $0x3b0] sm:$0xff]
    %v154 = vld [vmem:[%s0 + $0x3b8] sm:$0xff]
    %v155 = vld [vmem:[%s0 + $0x3c0] sm:$0xff]
    %v156 = vld [vmem:[%s0 + $0x3c8] sm:$0xff]
    %v157 = vld [vmem:[%s0 + $0x3d0] sm:$0xff]
    %v158 = vld [vmem:[%s0 + $0x3d8] sm:$0xff]
    %v159 = vld [vmem:[%s0 + $0x3e0] sm:$0xff]
    %v160 = vld [vmem:[%s0 + $0x3e8] sm:$0xff]
    %v161 = vld [vmem:[%s0 + $0x3f0] sm:$0xff]
    %v162 = vld [vmem:[%s0 + $0x3f8] sm:$0xff]
    %164 = vset.pattern.permute.xlu0 0
    %165 = vperm.xlu0 %164, %v26
    %v166 = vpop.permute.xlu0 %165
    %169 = vset.pattern.permute.xlu0 0
    %170 = vperm.xlu0 %169, %v27
    %v171 = vpop.permute.xlu0 %170
    %174 = vset.pattern.permute.xlu0 0
    %175 = vperm.xlu0 %174, %v28
    %v176 = vpop.permute.xlu0 %175
    %179 = vset.pattern.permute.xlu0 0
    %180 = vperm.xlu0 %179, %v29
    %v181 = vpop.permute.xlu0 %180
    %vm183 = vcmask 261120
    %v185 = vsel %vm183, %v22, 0
    %v188 = vsel %vm183, %v23, 0
    %v191 = vsel %vm183, %v24, 0
    %v194 = vsel %vm183, %v25, 0
    %v197 = vsel %vm183, %v35, 0
    %v200 = vsel %vm183, %v36, 0
    %v203 = vsel %vm183, %v37, 0
    %v206 = vsel %vm183, %v38, 0
    %v209 = vsel %vm183, %v39, 0
    %v212 = vsel %vm183, %v40, 0
    %v215 = vsel %vm183, %v41, 0
    %v218 = vsel %vm183, %v42, 0
    %v221 = vsel %vm183, %v43, 0
    %v224 = vsel %vm183, %v44, 0
    %v227 = vsel %vm183, %v45, 0
    %v230 = vsel %vm183, %v46, 0
    %v233 = vsel %vm183, %v47, 0
    %v236 = vsel %vm183, %v48, 0
    %v239 = vsel %vm183, %v49, 0
    %v242 = vsel %vm183, %v50, 0
    %v245 = vsel %vm183, %v51, 0
    %v248 = vsel %vm183, %v52, 0
    %v251 = vsel %vm183, %v53, 0
    %v254 = vsel %vm183, %v54, 0
    %v257 = vsel %vm183, %v55, 0
    %v260 = vsel %vm183, %v56, 0
    %v263 = vsel %vm183, %v57, 0
    %v266 = vsel %vm183, %v58, 0
    %v269 = vsel %vm183, %v59, 0
    %v272 = vsel %vm183, %v60, 0
    %v275 = vsel %vm183, %v61, 0
    %v278 = vsel %vm183, %v62, 0
    %v281 = vsel %vm183, %v63, 0
    %v284 = vsel %vm183, %v64, 0
    %v287 = vsel %vm183, %v65, 0
    %v290 = vsel %vm183, %v66, 0
    %v293 = vsel %vm183, %v67, 0
    %v296 = vsel %vm183, %v68, 0
    %v299 = vsel %vm183, %v69, 0
    %v302 = vsel %vm183, %v70, 0
    %v305 = vsel %vm183, %v71, 0
    %v308 = vsel %vm183, %v72, 0
    %v311 = vsel %vm183, %v73, 0
    %v314 = vsel %vm183, %v74, 0
    %v317 = vsel %vm183, %v75, 0
    %v320 = vsel %vm183, %v76, 0
    %v323 = vsel %vm183, %v77, 0
    %v326 = vsel %vm183, %v78, 0
    %v329 = vsel %vm183, %v79, 0
    %v332 = vsel %vm183, %v80, 0
    %v335 = vsel %vm183, %v81, 0
    %v338 = vsel %vm183, %v82, 0
    %v341 = vsel %vm183, %v83, 0
    %v344 = vsel %vm183, %v84, 0
    %v347 = vsel %vm183, %v85, 0
    %v350 = vsel %vm183, %v86, 0
    %v353 = vsel %vm183, %v87, 0
    %v356 = vsel %vm183, %v88, 0
    %v359 = vsel %vm183, %v89, 0
    %v362 = vsel %vm183, %v90, 0
    %v365 = vsel %vm183, %v91, 0
    %v368 = vsel %vm183, %v92, 0
    %v371 = vsel %vm183, %v93, 0
    %v374 = vsel %vm183, %v94, 0
    %v377 = vsel %vm183, %v95, 0
    %v380 = vsel %vm183, %v96, 0
    %v383 = vsel %vm183, %v97, 0
    %v386 = vsel %vm183, %v98, 0
    %v389 = vsel %vm183, %v99, 0
    %v392 = vsel %vm183, %v100, 0
    %v395 = vsel %vm183, %v101, 0
    %v398 = vsel %vm183, %v102, 0
    %v401 = vsel %vm183, %v103, 0
    %v404 = vsel %vm183, %v104, 0
    %v407 = vsel %vm183, %v105, 0
    %v410 = vsel %vm183, %v106, 0
    %v413 = vsel %vm183, %v107, 0
    %v416 = vsel %vm183, %v108, 0
    %v419 = vsel %vm183, %v109, 0
    %v422 = vsel %vm183, %v110, 0
    %v425 = vsel %vm183, %v111, 0
    %v428 = vsel %vm183, %v112, 0
    %v431 = vsel %vm183, %v113, 0
    %v434 = vsel %vm183, %v114, 0
    %v437 = vsel %vm183, %v115, 0
    %v440 = vsel %vm183, %v116, 0
    %v443 = vsel %vm183, %v117, 0
    %v446 = vsel %vm183, %v118, 0
    %v449 = vsel %vm183, %v119, 0
    %v452 = vsel %vm183, %v120, 0
    %v455 = vsel %vm183, %v121, 0
    %v458 = vsel %vm183, %v122, 0
    %v461 = vsel %vm183, %v123, 0
    %v464 = vsel %vm183, %v124, 0
    %v467 = vsel %vm183, %v125, 0
    %v470 = vsel %vm183, %v126, 0
    %v473 = vsel %vm183, %v127, 0
    %v476 = vsel %vm183, %v128, 0
    %v479 = vsel %vm183, %v129, 0
    %v482 = vsel %vm183, %v130, 0
    %v485 = vsel %vm183, %v131, 0
    %v488 = vsel %vm183, %v132, 0
    %v491 = vsel %vm183, %v133, 0
    %v494 = vsel %vm183, %v134, 0
    %v497 = vsel %vm183, %v135, 0
    %v500 = vsel %vm183, %v136, 0
    %v503 = vsel %vm183, %v137, 0
    %v506 = vsel %vm183, %v138, 0
    %v509 = vsel %vm183, %v139, 0
    %v512 = vsel %vm183, %v140, 0
    %v515 = vsel %vm183, %v141, 0
    %v518 = vsel %vm183, %v142, 0
    %v521 = vsel %vm183, %v143, 0
    %v524 = vsel %vm183, %v144, 0
    %v527 = vsel %vm183, %v145, 0
    %v530 = vsel %vm183, %v146, 0
    %v533 = vsel %vm183, %v147, 0
    %v536 = vsel %vm183, %v148, 0
    %v539 = vsel %vm183, %v149, 0
    %v542 = vsel %vm183, %v150, 0
    %v545 = vsel %vm183, %v151, 0
    %v548 = vsel %vm183, %v152, 0
    %v551 = vsel %vm183, %v153, 0
    %v554 = vsel %vm183, %v154, 0
    %v557 = vsel %vm183, %v155, 0
    %v560 = vsel %vm183, %v156, 0
    %v563 = vsel %vm183, %v157, 0
    %v566 = vsel %vm183, %v158, 0
    %v569 = vsel %vm183, %v159, 0
    %v572 = vsel %vm183, %v160, 0
    %v575 = vsel %vm183, %v161, 0
    %v578 = vsel %vm183, %v162, 0
    %580 = vmatprep.subr.mxu0 0.0
    %581 = vmatpush1.xpose.msra.mxu0 %v242
    %582 = vmatprep.subr.mxu0 0.0
    %583 = vmatpush1.xpose.msra.mxu0 %v239
    %584 = vmatprep.subr.mxu0 0.0
    %585 = vmatpush1.xpose.msra.mxu0 %v236
    %586 = vmatprep.subr.mxu0 0.0
    %587 = vmatpush1.xpose.msra.mxu0 %v233
    %588 = vmatprep.subr.mxu0 0.0
    %589 = vmatpush1.xpose.msra.mxu0 %v230
    %590 = vmatprep.subr.mxu0 0.0
    %591 = vmatpush1.xpose.msra.mxu0 %v227
    %592 = vmatprep.subr.mxu0 0.0
    %593 = vmatpush1.xpose.msra.mxu0 %v224
    %594 = vmatprep.subr.mxu0 0.0
    %595 = vmatpush1.xpose.msra.mxu0 %v221
    %596 = vmatprep.subr.mxu0 0.0
    %597 = vmatpush1.xpose.msra.mxu0 %v218
    %598 = vmatprep.subr.mxu0 0.0
    %599 = vmatpush1.xpose.msra.mxu0 %v215
    %600 = vmatprep.subr.mxu0 0.0
    %601 = vmatpush1.xpose.msra.mxu0 %v212
    %602 = vmatprep.subr.mxu0 0.0
    %603 = vmatpush1.xpose.msra.mxu0 %v209
    %604 = vmatprep.subr.mxu0 0.0
    %605 = vmatpush1.xpose.msra.mxu0 %v206
    %606 = vmatprep.subr.mxu0 0.0
    %607 = vmatpush1.xpose.msra.mxu0 %v203
    %608 = vmatprep.subr.mxu0 0.0
    %609 = vmatpush1.xpose.msra.mxu0 %v200
    %610 = vmatprep.subr.mxu0 0.0
    %611 = vmatpush1.xpose.msra.mxu0 %v197
    %612 = vmatprep.subr.mxu0 0.0
    %613 = vmatpush2.xpose.msra.mxu0 %v290
    %614 = vmatprep.subr.mxu0 0.0
    %615 = vmatpush2.xpose.msra.mxu0 %v287
    %616 = vmatprep.subr.mxu0 0.0
    %617 = vmatpush2.xpose.msra.mxu0 %v284
    %618 = vmatprep.subr.mxu0 0.0
    %619 = vmatpush2.xpose.msra.mxu0 %v281
    %620 = vmatprep.subr.mxu0 0.0
    %621 = vmatpush2.xpose.msra.mxu0 %v278
    %622 = vmatprep.subr.mxu0 0.0
    %623 = vmatpush2.xpose.msra.mxu0 %v275
    %624 = vmatprep.subr.mxu0 0.0
    %625 = vmatpush2.xpose.msra.mxu0 %v272
    %626 = vmatprep.subr.mxu0 0.0
    %627 = vmatpush2.xpose.msra.mxu0 %v269
    %628 = vmatprep.subr.mxu0 0.0
    %629 = vmatpush2.xpose.msra.mxu0 %v266
    %630 = vmatprep.subr.mxu0 0.0
    %631 = vmatpush2.xpose.msra.mxu0 %v263
    %632 = vmatprep.subr.mxu0 0.0
    %633 = vmatpush2.xpose.msra.mxu0 %v260
    %634 = vmatprep.subr.mxu0 0.0
    %635 = vmatpush2.xpose.msra.mxu0 %v257
    %636 = vmatprep.subr.mxu0 0.0
    %637 = vmatpush2.xpose.msra.mxu0 %v254
    %638 = vmatprep.subr.mxu0 0.0
    %639 = vmatpush2.xpose.msra.mxu0 %v251
    %640 = vmatprep.subr.mxu0 0.0
    %641 = vmatpush2.xpose.msra.mxu0 %v248
    %642 = vmatprep.subr.mxu0 0.0
    %643 = vmatpush2.xpose.msra.mxu0 %v245
    %644 = vmatprep.mubr.f32.mxu0 0.0
    %645 = vmatmul.mubr.f32.gmra.mxu0 %v185
    %v646 = vpop.f32.mrf.mxu0
    %v647 = vadd.f32 %v166, %v646
    %v648 = vpop.f32.mrf.mxu0
    %v649 = vadd.f32 %v166, %v648
    %650 = vmatprep.mubr.f32.mxu0 0.0
    %651 = vmatmul.mubr.f32.gmra.mxu0 %v188
    %v652 = vpop.f32.mrf.mxu0
    %v653 = vadd.f32 %v171, %v652
    %v654 = vpop.f32.mrf.mxu0
    %v655 = vadd.f32 %v171, %v654
    %656 = vmatprep.mubr.f32.mxu0 0.0
    %657 = vmatmul.mubr.f32.gmra.mxu0 %v191
    %v658 = vpop.f32.mrf.mxu0
    %v659 = vadd.f32 %v176, %v658
    %v660 = vpop.f32.mrf.mxu0
    %v661 = vadd.f32 %v176, %v660
    %662 = vmatprep.mubr.f32.mxu0 0.0
    %663 = vmatmul.mubr.f32.gmra.mxu0 %v194
    %v664 = vpop.f32.mrf.mxu0
    %v665 = vadd.f32 %v181, %v664
    %v666 = vpop.f32.mrf.mxu0
    %v667 = vadd.f32 %v181, %v666
    %668 = vdwg.mxu0
    %669 = vmatprep.subr.mxu0 0.0
    %670 = vmatpush1.xpose.msra.mxu0 %v338
    %671 = vmatprep.subr.mxu0 0.0
    %672 = vmatpush1.xpose.msra.mxu0 %v335
    %673 = vmatprep.subr.mxu0 0.0
    %674 = vmatpush1.xpose.msra.mxu0 %v332
    %675 = vmatprep.subr.mxu0 0.0
    %676 = vmatpush1.xpose.msra.mxu0 %v329
    %677 = vmatprep.subr.mxu0 0.0
    %678 = vmatpush1.xpose.msra.mxu0 %v326
    %679 = vmatprep.subr.mxu0 0.0
    %680 = vmatpush1.xpose.msra.mxu0 %v323
    %681 = vmatprep.subr.mxu0 0.0
    %682 = vmatpush1.xpose.msra.mxu0 %v320
    %683 = vmatprep.subr.mxu0 0.0
    %684 = vmatpush1.xpose.msra.mxu0 %v317
    %685 = vmatprep.subr.mxu0 0.0
    %686 = vmatpush1.xpose.msra.mxu0 %v314
    %687 = vmatprep.subr.mxu0 0.0
    %688 = vmatpush1.xpose.msra.mxu0 %v311
    %689 = vmatprep.subr.mxu0 0.0
    %690 = vmatpush1.xpose.msra.mxu0 %v308
    %691 = vmatprep.subr.mxu0 0.0
    %692 = vmatpush1.xpose.msra.mxu0 %v305
    %693 = vmatprep.subr.mxu0 0.0
    %694 = vmatpush1.xpose.msra.mxu0 %v302
    %695 = vmatprep.subr.mxu0 0.0
    %696 = vmatpush1.xpose.msra.mxu0 %v299
    %697 = vmatprep.subr.mxu0 0.0
    %698 = vmatpush1.xpose.msra.mxu0 %v296
    %699 = vmatprep.subr.mxu0 0.0
    %700 = vmatpush1.xpose.msra.mxu0 %v293
    %701 = vmatprep.subr.mxu0 0.0
    %702 = vmatpush2.xpose.msra.mxu0 %v386
    %703 = vmatprep.subr.mxu0 0.0
    %704 = vmatpush2.xpose.msra.mxu0 %v383
    %705 = vmatprep.subr.mxu0 0.0
    %706 = vmatpush2.xpose.msra.mxu0 %v380
    %707 = vmatprep.subr.mxu0 0.0
    %708 = vmatpush2.xpose.msra.mxu0 %v377
    %709 = vmatprep.subr.mxu0 0.0
    %710 = vmatpush2.xpose.msra.mxu0 %v374
    %711 = vmatprep.subr.mxu0 0.0
    %712 = vmatpush2.xpose.msra.mxu0 %v371
    %713 = vmatprep.subr.mxu0 0.0
    %714 = vmatpush2.xpose.msra.mxu0 %v368
    %715 = vmatprep.subr.mxu0 0.0
    %716 = vmatpush2.xpose.msra.mxu0 %v365
    %717 = vmatprep.subr.mxu0 0.0
    %718 = vmatpush2.xpose.msra.mxu0 %v362
    %719 = vmatprep.subr.mxu0 0.0
    %720 = vmatpush2.xpose.msra.mxu0 %v359
    %721 = vmatprep.subr.mxu0 0.0
    %722 = vmatpush2.xpose.msra.mxu0 %v356
    %723 = vmatprep.subr.mxu0 0.0
    %724 = vmatpush2.xpose.msra.mxu0 %v353
    %725 = vmatprep.subr.mxu0 0.0
    %726 = vmatpush2.xpose.msra.mxu0 %v350
    %727 = vmatprep.subr.mxu0 0.0
    %728 = vmatpush2.xpose.msra.mxu0 %v347
    %729 = vmatprep.subr.mxu0 0.0
    %730 = vmatpush2.xpose.msra.mxu0 %v344
    %731 = vmatprep.subr.mxu0 0.0
    %732 = vmatpush2.xpose.msra.mxu0 %v341
    %733 = vmatprep.mubr.f32.mxu0 0.0
    %734 = vmatmul.mubr.f32.gmra.mxu0 %v185
    %v735 = vpop.f32.mrf.mxu0
    %v736 = vadd.f32 %v166, %v735
    %v737 = vpop.f32.mrf.mxu0
    %v738 = vadd.f32 %v166, %v737
    %739 = vmatprep.mubr.f32.mxu0 0.0
    %740 = vmatmul.mubr.f32.gmra.mxu0 %v188
    %v741 = vpop.f32.mrf.mxu0
    %v742 = vadd.f32 %v171, %v741
    %v743 = vpop.f32.mrf.mxu0
    %v744 = vadd.f32 %v171, %v743
    %745 = vmatprep.mubr.f32.mxu0 0.0
    %746 = vmatmul.mubr.f32.gmra.mxu0 %v191
    %v747 = vpop.f32.mrf.mxu0
    %v748 = vadd.f32 %v176, %v747
    %v749 = vpop.f32.mrf.mxu0
    %v750 = vadd.f32 %v176, %v749
    %751 = vmatprep.mubr.f32.mxu0 0.0
    %752 = vmatmul.mubr.f32.gmra.mxu0 %v194
    %v753 = vpop.f32.mrf.mxu0
    %v754 = vadd.f32 %v181, %v753
    %v755 = vpop.f32.mrf.mxu0
    %v756 = vadd.f32 %v181, %v755
    %757 = vdwg.mxu0
    %758 = vmatprep.subr.mxu0 0.0
    %759 = vmatpush1.xpose.msra.mxu0 %v434
    %760 = vmatprep.subr.mxu0 0.0
    %761 = vmatpush1.xpose.msra.mxu0 %v431
    %762 = vmatprep.subr.mxu0 0.0
    %763 = vmatpush1.xpose.msra.mxu0 %v428
    %764 = vmatprep.subr.mxu0 0.0
    %765 = vmatpush1.xpose.msra.mxu0 %v425
    %766 = vmatprep.subr.mxu0 0.0
    %767 = vmatpush1.xpose.msra.mxu0 %v422
    %768 = vmatprep.subr.mxu0 0.0
    %769 = vmatpush1.xpose.msra.mxu0 %v419
    %770 = vmatprep.subr.mxu0 0.0
    %771 = vmatpush1.xpose.msra.mxu0 %v416
    %772 = vmatprep.subr.mxu0 0.0
    %773 = vmatpush1.xpose.msra.mxu0 %v413
    %774 = vmatprep.subr.mxu0 0.0
    %775 = vmatpush1.xpose.msra.mxu0 %v410
    %776 = vmatprep.subr.mxu0 0.0
    %777 = vmatpush1.xpose.msra.mxu0 %v407
    %778 = vmatprep.subr.mxu0 0.0
    %779 = vmatpush1.xpose.msra.mxu0 %v404
    %780 = vmatprep.subr.mxu0 0.0
    %781 = vmatpush1.xpose.msra.mxu0 %v401
    %782 = vmatprep.subr.mxu0 0.0
    %783 = vmatpush1.xpose.msra.mxu0 %v398
    %784 = vmatprep.subr.mxu0 0.0
    %785 = vmatpush1.xpose.msra.mxu0 %v395
    %786 = vmatprep.subr.mxu0 0.0
    %787 = vmatpush1.xpose.msra.mxu0 %v392
    %788 = vmatprep.subr.mxu0 0.0
    %789 = vmatpush1.xpose.msra.mxu0 %v389
    %790 = vmatprep.subr.mxu0 0.0
    %791 = vmatpush2.xpose.msra.mxu0 %v482
    %792 = vmatprep.subr.mxu0 0.0
    %793 = vmatpush2.xpose.msra.mxu0 %v479
    %794 = vmatprep.subr.mxu0 0.0
    %795 = vmatpush2.xpose.msra.mxu0 %v476
    %796 = vmatprep.subr.mxu0 0.0
    %797 = vmatpush2.xpose.msra.mxu0 %v473
    %798 = vmatprep.subr.mxu0 0.0
    %799 = vmatpush2.xpose.msra.mxu0 %v470
    %800 = vmatprep.subr.mxu0 0.0
    %801 = vmatpush2.xpose.msra.mxu0 %v467
    %802 = vmatprep.subr.mxu0 0.0
    %803 = vmatpush2.xpose.msra.mxu0 %v464
    %804 = vmatprep.subr.mxu0 0.0
    %805 = vmatpush2.xpose.msra.mxu0 %v461
    %806 = vmatprep.subr.mxu0 0.0
    %807 = vmatpush2.xpose.msra.mxu0 %v458
    %808 = vmatprep.subr.mxu0 0.0
    %809 = vmatpush2.xpose.msra.mxu0 %v455
    %810 = vmatprep.subr.mxu0 0.0
    %811 = vmatpush2.xpose.msra.mxu0 %v452
    %812 = vmatprep.subr.mxu0 0.0
    %813 = vmatpush2.xpose.msra.mxu0 %v449
    %814 = vmatprep.subr.mxu0 0.0
    %815 = vmatpush2.xpose.msra.mxu0 %v446
    %816 = vmatprep.subr.mxu0 0.0
    %817 = vmatpush2.xpose.msra.mxu0 %v443
    %818 = vmatprep.subr.mxu0 0.0
    %819 = vmatpush2.xpose.msra.mxu0 %v440
    %820 = vmatprep.subr.mxu0 0.0
    %821 = vmatpush2.xpose.msra.mxu0 %v437
    %822 = vmatprep.mubr.f32.mxu0 0.0
    %823 = vmatmul.mubr.f32.gmra.mxu0 %v185
    %v824 = vpop.f32.mrf.mxu0
    %v825 = vadd.f32 %v166, %v824
    %v826 = vpop.f32.mrf.mxu0
    %v827 = vadd.f32 %v166, %v826
    %828 = vmatprep.mubr.f32.mxu0 0.0
    %829 = vmatmul.mubr.f32.gmra.mxu0 %v188
    %v830 = vpop.f32.mrf.mxu0
    %v831 = vadd.f32 %v171, %v830
    %v832 = vpop.f32.mrf.mxu0
    %v833 = vadd.f32 %v171, %v832
    %834 = vmatprep.mubr.f32.mxu0 0.0
    %835 = vmatmul.mubr.f32.gmra.mxu0 %v191
    %v836 = vpop.f32.mrf.mxu0
    %v837 = vadd.f32 %v176, %v836
    %v838 = vpop.f32.mrf.mxu0
    %v839 = vadd.f32 %v176, %v838
    %840 = vmatprep.mubr.f32.mxu0 0.0
    %841 = vmatmul.mubr.f32.gmra.mxu0 %v194
    %v842 = vpop.f32.mrf.mxu0
    %v843 = vadd.f32 %v181, %v842
    %v844 = vpop.f32.mrf.mxu0
    %v845 = vadd.f32 %v181, %v844
    %846 = vdwg.mxu0
    %847 = vmatprep.subr.mxu0 0.0
    %848 = vmatpush1.xpose.msra.mxu0 %v530
    %849 = vmatprep.subr.mxu0 0.0
    %850 = vmatpush1.xpose.msra.mxu0 %v527
    %851 = vmatprep.subr.mxu0 0.0
    %852 = vmatpush1.xpose.msra.mxu0 %v524
    %853 = vmatprep.subr.mxu0 0.0
    %854 = vmatpush1.xpose.msra.mxu0 %v521
    %855 = vmatprep.subr.mxu0 0.0
    %856 = vmatpush1.xpose.msra.mxu0 %v518
    %857 = vmatprep.subr.mxu0 0.0
    %858 = vmatpush1.xpose.msra.mxu0 %v515
    %859 = vmatprep.subr.mxu0 0.0
    %860 = vmatpush1.xpose.msra.mxu0 %v512
    %861 = vmatprep.subr.mxu0 0.0
    %862 = vmatpush1.xpose.msra.mxu0 %v509
    %863 = vmatprep.subr.mxu0 0.0
    %864 = vmatpush1.xpose.msra.mxu0 %v506
    %865 = vmatprep.subr.mxu0 0.0
    %866 = vmatpush1.xpose.msra.mxu0 %v503
    %867 = vmatprep.subr.mxu0 0.0
    %868 = vmatpush1.xpose.msra.mxu0 %v500
    %869 = vmatprep.subr.mxu0 0.0
    %870 = vmatpush1.xpose.msra.mxu0 %v497
    %871 = vmatprep.subr.mxu0 0.0
    %872 = vmatpush1.xpose.msra.mxu0 %v494
    %873 = vmatprep.subr.mxu0 0.0
    %874 = vmatpush1.xpose.msra.mxu0 %v491
    %875 = vmatprep.subr.mxu0 0.0
    %876 = vmatpush1.xpose.msra.mxu0 %v488
    %877 = vmatprep.subr.mxu0 0.0
    %878 = vmatpush1.xpose.msra.mxu0 %v485
    %879 = vmatprep.subr.mxu0 0.0
    %880 = vmatpush2.xpose.msra.mxu0 %v578
    %881 = vmatprep.subr.mxu0 0.0
    %882 = vmatpush2.xpose.msra.mxu0 %v575
    %883 = vmatprep.subr.mxu0 0.0
    %884 = vmatpush2.xpose.msra.mxu0 %v572
    %885 = vmatprep.subr.mxu0 0.0
    %886 = vmatpush2.xpose.msra.mxu0 %v569
    %887 = vmatprep.subr.mxu0 0.0
    %888 = vmatpush2.xpose.msra.mxu0 %v566
    %889 = vmatprep.subr.mxu0 0.0
    %890 = vmatpush2.xpose.msra.mxu0 %v563
    %891 = vmatprep.subr.mxu0 0.0
    %892 = vmatpush2.xpose.msra.mxu0 %v560
    %893 = vmatprep.subr.mxu0 0.0
    %894 = vmatpush2.xpose.msra.mxu0 %v557
    %895 = vmatprep.subr.mxu0 0.0
    %896 = vmatpush2.xpose.msra.mxu0 %v554
    %897 = vmatprep.subr.mxu0 0.0
    %898 = vmatpush2.xpose.msra.mxu0 %v551
    %899 = vmatprep.subr.mxu0 0.0
    %900 = vmatpush2.xpose.msra.mxu0 %v548
    %901 = vmatprep.subr.mxu0 0.0
    %902 = vmatpush2.xpose.msra.mxu0 %v545
    %903 = vmatprep.subr.mxu0 0.0
    %904 = vmatpush2.xpose.msra.mxu0 %v542
    %905 = vmatprep.subr.mxu0 0.0
    %906 = vmatpush2.xpose.msra.mxu0 %v539
    %907 = vmatprep.subr.mxu0 0.0
    %908 = vmatpush2.xpose.msra.mxu0 %v536
    %909 = vmatprep.subr.mxu0 0.0
    %910 = vmatpush2.xpose.msra.mxu0 %v533
    %911 = vmatprep.mubr.f32.mxu0 0.0
    %912 = vmatmul.mubr.f32.gmra.mxu0 %v185
    %v913 = vpop.f32.mrf.mxu0
    %v914 = vadd.f32 %v166, %v913
    %v915 = vpop.f32.mrf.mxu0
    %v916 = vadd.f32 %v166, %v915
    %917 = vmatprep.mubr.f32.mxu0 0.0
    %918 = vmatmul.mubr.f32.gmra.mxu0 %v188
    %v919 = vpop.f32.mrf.mxu0
    %v920 = vadd.f32 %v171, %v919
    %v921 = vpop.f32.mrf.mxu0
    %v922 = vadd.f32 %v171, %v921
    %923 = vmatprep.mubr.f32.mxu0 0.0
    %924 = vmatmul.mubr.f32.gmra.mxu0 %v191
    %v925 = vpop.f32.mrf.mxu0
    %v926 = vadd.f32 %v176, %v925
    %v927 = vpop.f32.mrf.mxu0
    %v928 = vadd.f32 %v176, %v927
    %929 = vmatprep.mubr.f32.mxu0 0.0
    %930 = vmatmul.mubr.f32.gmra.mxu0 %v194
    %v931 = vpop.f32.mrf.mxu0
    %v932 = vadd.f32 %v181, %v931
    %v933 = vpop.f32.mrf.mxu0
    %v934 = vadd.f32 %v181, %v933
    %935 = vdwg.mxu0
    %v936 = vmax.f32 %v647, 0.0
    %v937 = vmax.f32 %v649, 0.0
    %v938 = vmax.f32 %v736, 0.0
    %v939 = vmax.f32 %v738, 0.0
    %v940 = vmax.f32 %v825, 0.0
    %v941 = vmax.f32 %v827, 0.0
    %v942 = vmax.f32 %v914, 0.0
    %v943 = vmax.f32 %v916, 0.0
    %v944 = vmax.f32 %v653, 0.0
    %v945 = vmax.f32 %v655, 0.0
    %v946 = vmax.f32 %v742, 0.0
    %v947 = vmax.f32 %v744, 0.0
    %v948 = vmax.f32 %v831, 0.0
    %v949 = vmax.f32 %v833, 0.0
    %v950 = vmax.f32 %v920, 0.0
    %v951 = vmax.f32 %v922, 0.0
    %v952 = vmax.f32 %v659, 0.0
    %v953 = vmax.f32 %v661, 0.0
    %v954 = vmax.f32 %v748, 0.0
    %v955 = vmax.f32 %v750, 0.0
    %v956 = vmax.f32 %v837, 0.0
    %v957 = vmax.f32 %v839, 0.0
    %v958 = vmax.f32 %v926, 0.0
    %v959 = vmax.f32 %v928, 0.0
    %v960 = vmax.f32 %v665, 0.0
    %v961 = vmax.f32 %v667, 0.0
    %v962 = vmax.f32 %v754, 0.0
    %v963 = vmax.f32 %v756, 0.0
    %v964 = vmax.f32 %v843, 0.0
    %v965 = vmax.f32 %v845, 0.0
    %v966 = vmax.f32 %v932, 0.0
    %v967 = vmax.f32 %v934, 0.0
    %969 = vset.pattern.permute.xlu0 0
    %970 = vperm.xlu0 %969, %v30
    %v971 = vpop.permute.xlu0 %970
    %974 = vset.pattern.permute.xlu0 0
    %975 = vperm.xlu0 %974, %v31
    %v976 = vpop.permute.xlu0 %975
    %979 = vset.pattern.permute.xlu0 0
    %980 = vperm.xlu0 %979, %v32
    %v981 = vpop.permute.xlu0 %980
    %984 = vset.pattern.permute.xlu0 0
    %985 = vperm.xlu0 %984, %v33
    %v986 = vpop.permute.xlu0 %985
    %v988 = vmul.f32 %v936, %v971
    %v989 = vmul.f32 %v937, %v971
    %v990 = vmul.f32 %v938, %v971
    %v991 = vmul.f32 %v939, %v971
    %v992 = vmul.f32 %v940, %v971
    %v993 = vmul.f32 %v941, %v971
    %v994 = vmul.f32 %v942, %v971
    %v995 = vmul.f32 %v943, %v971
    %v996 = vmul.f32 %v944, %v976
    %v997 = vmul.f32 %v945, %v976
    %v998 = vmul.f32 %v946, %v976
    %v999 = vmul.f32 %v947, %v976
    %v1000 = vmul.f32 %v948, %v976
    %v1001 = vmul.f32 %v949, %v976
    %v1002 = vmul.f32 %v950, %v976
    %v1003 = vmul.f32 %v951, %v976
    %v1004 = vmul.f32 %v952, %v981
    %v1005 = vmul.f32 %v953, %v981
    %v1006 = vmul.f32 %v954, %v981
    %v1007 = vmul.f32 %v955, %v981
    %v1008 = vmul.f32 %v956, %v981
    %v1009 = vmul.f32 %v957, %v981
    %v1010 = vmul.f32 %v958, %v981
    %v1011 = vmul.f32 %v959, %v981
    %v1012 = vmul.f32 %v960, %v986
    %v1013 = vmul.f32 %v961, %v986
    %v1014 = vmul.f32 %v962, %v986
    %v1015 = vmul.f32 %v963, %v986
    %v1016 = vmul.f32 %v964, %v986
    %v1017 = vmul.f32 %v965, %v986
    %v1018 = vmul.f32 %v966, %v986
    %v1019 = vmul.f32 %v967, %v986
    %v1020 = vadd.f32 %v988, %v996
    %v1021 = vadd.f32 %v1020, %v1004
    %v1022 = vadd.f32 %v1021, %v1012
    %v1023 = vrot.slane %v1022, 4
    %v1024 = vadd.f32 %v1022, %v1023
    %v1025 = vrot.slane %v1024, 2
    %v1026 = vadd.f32 %v1024, %v1025
    %v1027 = vrot.slane %v1026, 1
    %v1028 = vadd.f32 %v1026, %v1027
    %v1029 = vadd.f32 %v989, %v997
    %v1030 = vadd.f32 %v1029, %v1005
    %v1031 = vadd.f32 %v1030, %v1013
    %v1032 = vrot.slane %v1031, 4
    %v1033 = vadd.f32 %v1031, %v1032
    %v1034 = vrot.slane %v1033, 2
    %v1035 = vadd.f32 %v1033, %v1034
    %v1036 = vrot.slane %v1035, 1
    %v1037 = vadd.f32 %v1035, %v1036
    %v1038 = vadd.f32 %v990, %v998
    %v1039 = vadd.f32 %v1038, %v1006
    %v1040 = vadd.f32 %v1039, %v1014
    %v1041 = vrot.slane %v1040, 4
    %v1042 = vadd.f32 %v1040, %v1041
    %v1043 = vrot.slane %v1042, 2
    %v1044 = vadd.f32 %v1042, %v1043
    %v1045 = vrot.slane %v1044, 1
    %v1046 = vadd.f32 %v1044, %v1045
    %v1047 = vadd.f32 %v991, %v999
    %v1048 = vadd.f32 %v1047, %v1007
    %v1049 = vadd.f32 %v1048, %v1015
    %v1050 = vrot.slane %v1049, 4
    %v1051 = vadd.f32 %v1049, %v1050
    %v1052 = vrot.slane %v1051, 2
    %v1053 = vadd.f32 %v1051, %v1052
    %v1054 = vrot.slane %v1053, 1
    %v1055 = vadd.f32 %v1053, %v1054
    %v1056 = vadd.f32 %v992, %v1000
    %v1057 = vadd.f32 %v1056, %v1008
    %v1058 = vadd.f32 %v1057, %v1016
    %v1059 = vrot.slane %v1058, 4
    %v1060 = vadd.f32 %v1058, %v1059
    %v1061 = vrot.slane %v1060, 2
    %v1062 = vadd.f32 %v1060, %v1061
    %v1063 = vrot.slane %v1062, 1
    %v1064 = vadd.f32 %v1062, %v1063
    %v1065 = vadd.f32 %v993, %v1001
    %v1066 = vadd.f32 %v1065, %v1009
    %v1067 = vadd.f32 %v1066, %v1017
    %v1068 = vrot.slane %v1067, 4
    %v1069 = vadd.f32 %v1067, %v1068
    %v1070 = vrot.slane %v1069, 2
    %v1071 = vadd.f32 %v1069, %v1070
    %v1072 = vrot.slane %v1071, 1
    %v1073 = vadd.f32 %v1071, %v1072
    %v1074 = vadd.f32 %v994, %v1002
    %v1075 = vadd.f32 %v1074, %v1010
    %v1076 = vadd.f32 %v1075, %v1018
    %v1077 = vrot.slane %v1076, 4
    %v1078 = vadd.f32 %v1076, %v1077
    %v1079 = vrot.slane %v1078, 2
    %v1080 = vadd.f32 %v1078, %v1079
    %v1081 = vrot.slane %v1080, 1
    %v1082 = vadd.f32 %v1080, %v1081
    %v1083 = vadd.f32 %v995, %v1003
    %v1084 = vadd.f32 %v1083, %v1011
    %v1085 = vadd.f32 %v1084, %v1019
    %v1086 = vrot.slane %v1085, 4
    %v1087 = vadd.f32 %v1085, %v1086
    %v1088 = vrot.slane %v1087, 2
    %v1089 = vadd.f32 %v1087, %v1088
    %v1090 = vrot.slane %v1089, 1
    %v1091 = vadd.f32 %v1089, %v1090
    %v1092 = vstv %s34
    %v1093 = vadd.f32 %v1028, %v1092
    %v1094 = vadd.f32 %v1037, %v1092
    %v1095 = vadd.f32 %v1046, %v1092
    %v1096 = vadd.f32 %v1055, %v1092
    %v1097 = vadd.f32 %v1064, %v1092
    %v1098 = vadd.f32 %v1073, %v1092
    %v1099 = vadd.f32 %v1082, %v1092
    %v1100 = vadd.f32 %v1091, %v1092
    %v1101 = vmul.f32 %v1093, 0.5
    %v1102 = vmul.f32 %v1094, 0.5
    %v1103 = vmul.f32 %v1095, 0.5
    %v1104 = vmul.f32 %v1096, 0.5
    %v1105 = vmul.f32 %v1097, 0.5
    %v1106 = vmul.f32 %v1098, 0.5
    %v1107 = vmul.f32 %v1099, 0.5
    %v1108 = vmul.f32 %v1100, 0.5
    %v1109 = vtanh.pop %v1101
    %v1110 = vtanh.pop %v1102
    %v1111 = vtanh.pop %v1103
    %v1112 = vtanh.pop %v1104
    %v1113 = vtanh.pop %v1105
    %v1114 = vtanh.pop %v1106
    %v1115 = vtanh.pop %v1107
    %v1116 = vtanh.pop %v1108
    %v1117 = vadd.f32 %v1109, 1.0
    %v1118 = vadd.f32 %v1110, 1.0
    %v1119 = vadd.f32 %v1111, 1.0
    %v1120 = vadd.f32 %v1112, 1.0
    %v1121 = vadd.f32 %v1113, 1.0
    %v1122 = vadd.f32 %v1114, 1.0
    %v1123 = vadd.f32 %v1115, 1.0
    %v1124 = vadd.f32 %v1116, 1.0
    %v1125 = vmul.f32 %v1117, 0.5
    %v1126 = vmul.f32 %v1118, 0.5
    %v1127 = vmul.f32 %v1119, 0.5
    %v1128 = vmul.f32 %v1120, 0.5
    %v1129 = vmul.f32 %v1121, 0.5
    %v1130 = vmul.f32 %v1122, 0.5
    %v1131 = vmul.f32 %v1123, 0.5
    %v1132 = vmul.f32 %v1124, 0.5
    %v1141 = vcombine.low %v1125, %v1126
    %v1142 = vcombine.low %v1127, %v1128
    %v1143 = vcombine.low %v1129, %v1130
    %v1144 = vcombine.low %v1131, %v1132
    %v1146 = vunpack.c.l.s4 1966171168
    %v1147 = vunpack.c.0.s8 %v1146
    %v1148 = vlaneseq
    %v1149 = vshrl.u32 %v1148, 7
    %v1150 = vsub.s32 %v1147, %v1149
    %v1151 = vrot.slane %v1141, %v1150
    %v1153 = vunpack.c.l.s4 1966171168
    %v1154 = vunpack.c.0.s8 %v1153
    %v1155 = vlaneseq
    %v1156 = vshrl.u32 %v1155, 7
    %v1157 = vsub.s32 %v1154, %v1156
    %v1158 = vrot.slane %v1142, %v1157
    %v1160 = vunpack.c.l.s4 1966171168
    %v1161 = vunpack.c.0.s8 %v1160
    %v1162 = vlaneseq
    %v1163 = vshrl.u32 %v1162, 7
    %v1164 = vsub.s32 %v1161, %v1163
    %v1165 = vrot.slane %v1143, %v1164
    %v1167 = vunpack.c.l.s4 1966171168
    %v1168 = vunpack.c.0.s8 %v1167
    %v1169 = vlaneseq
    %v1170 = vshrl.u32 %v1169, 7
    %v1171 = vsub.s32 %v1168, %v1170
    %v1172 = vrot.slane %v1144, %v1171
    %v1173 = vcombine.low %v1151, %v1158
    %v1174 = vcombine.low %v1165, %v1172
    %v1176 = vunpack.c.l.s4 1966171168
    %v1177 = vunpack.c.0.s8 %v1176
    %v1178 = vlaneseq
    %v1179 = vshrl.u32 %v1178, 7
    %v1180 = vsub.s32 %v1177, %v1179
    %v1181 = vrot.slane %v1173, %v1180
    %v1183 = vunpack.c.l.s4 1966171168
    %v1184 = vunpack.c.0.s8 %v1183
    %v1185 = vlaneseq
    %v1186 = vshrl.u32 %v1185, 7
    %v1187 = vsub.s32 %v1184, %v1186
    %v1188 = vrot.slane %v1174, %v1187
    %v1189 = vcombine.low %v1181, %v1188
    %1191 = vst [vmem:[#allocation3] sm:$0xff] %v1189
    // Predicated region
    $region22: #{tpu_custom_call.1} parent=1 // pred_check
      _
    $region23: #{tpu_custom_call.1} parent=1 // pred_check_branch
      %1193 = sbr.rel (0) target = $region25
    $region24: #{tpu_custom_call.1} parent=1 // pred_region
      %s1195 = ssub.s32 128, 128
      %1196 = vsyncadd [#allocation4], %s1195
      %s1198 = sshll.u32 [#allocation3], 4
      %s1199 = int_to_ptr.vmem [resolvable:$true] %s1198
      %1201 = dma.vmem_to_hbm [thread:$0]  %s1199, 128, %s5, [#allocation4]
    $region25: #{tpu_custom_call.1} parent=1 // pred_fallthru
      _
    // Predicated region
    $region26: #{tpu_custom_call.1} parent=1 // pred_check
      _
    $region27: #{tpu_custom_call.1} parent=1 // pred_check_branch
      %1203 = sbr.rel (0) target = $region29
    $region28: #{tpu_custom_call.1} parent=1 // pred_region
      %1204 = dma.done [#allocation4], 128
    $region29: #{tpu_custom_call.1} parent=1 // pred_fallthru
      _
    %1205 = vsyncpa [#allocation4], 1

</llo_original>
